<compile_context>
chip_gen: v7x
topology: tpu7x:2x2x1
jax: 0.10.0
libtpu: 0.0.40
codegen_flags: <defaults>
</compile_context>

<pallas_src>
import jax
import jax.numpy as jnp
from jax.experimental import pallas as pl
from jax.experimental.pallas import tpu as pltpu

_LANES = 128
_ACC_SUBLANES = 8          # (8,128) f32 accumulator = exactly one vreg


def _neg_mean_sum_kernel(y_ref, acc_ref):
    """Grid: (num_tiles,).  y_ref: (tm, 128) input tile.
    acc_ref: (8, 128) f32 output block, resident across the reduction axis.
    Steady state is vld + vadd only; no per-tile cross-lane reduce."""
    @pl.when(pl.program_id(0) == 0)
    def _init():
        acc_ref[...] = jnp.zeros_like(acc_ref)

    tile = y_ref[...]
    # Regroup rows into vreg-shaped (8,128) slabs and add them elementwise
    # (leading-axis reduce -> pure vector adds, widened to f32).
    acc_ref[...] += jnp.sum(
        tile.reshape(-1, _ACC_SUBLANES, _LANES), axis=0, dtype=jnp.float32)


def generator_loss(y_fake: jax.Array, *, block_rows: int = 4096,
                   min_pallas_elems: int = 2048) -> jax.Array:
    """Pallas equivalent of GeneratorLoss.forward: scalar (-y_fake).mean()."""
    total = y_fake.size
    out_dtype = y_fake.dtype
    itemsize = jnp.dtype(y_fake.dtype).itemsize
    # Sublane packing per dtype: 8 rows for 4-byte, 16 for 2-byte, 32 for 1-byte.
    sub = max(_ACC_SUBLANES, 32 // max(1, itemsize))

    rows_all = total // _LANES

    # Tiny inputs: kernel dispatch + per-step overhead dwarfs the work.
    if total < min_pallas_elems or rows_all < sub:
        return jnp.mean(-y_fake.astype(jnp.float32)).astype(out_dtype)

    # ---- tile geometry: pick the tile COUNT first, then rows-per-tile rounded
    # DOWN to the sublane group -> the kernel region is a prefix of the data
    # (no HBM padding); leftover rows + sub-128 remainder go to the jnp tail.
    max_tile_rows = (4 * 1024 * 1024) // (_LANES * itemsize)     # <= 4 MiB / tile
    tm_target = max(2 * sub, min(block_rows, max_tile_rows))
    tm_target = (tm_target // sub) * sub
    num_tiles = max(1, pl.cdiv(rows_all, tm_target))
    tm = ((rows_all // num_tiles) // sub) * sub
    if tm == 0:
        return jnp.mean(-y_fake.astype(jnp.float32)).astype(out_dtype)

    kernel_rows = num_tiles * tm
    main = kernel_rows * _LANES                                  # kernel-covered prefix

    flat = y_fake.reshape(-1)
    y2d = (flat if main == total else flat[:main]).reshape(kernel_rows, _LANES)

    tile_bytes = tm * _LANES * itemsize

    # TODO(synk): on v7x shard the tile axis across both TensorCores
    # (pltpu.CORE_PARALLEL or pl.core_map over create_tensorcore_mesh) so both
    # cores issue DMAs and the full ~3.2 TB/s HBM bandwidth is used.
    acc = pl.pallas_call(
        _neg_mean_sum_kernel,
        out_shape=jax.ShapeDtypeStruct((_ACC_SUBLANES, _LANES), jnp.float32),
        grid=(num_tiles,),
        in_specs=[pl.BlockSpec((tm, _LANES), lambda i: (i, 0))],
        out_specs=pl.BlockSpec((_ACC_SUBLANES, _LANES), lambda i: (0, 0)),
        compiler_params=pltpu.CompilerParams(
            dimension_semantics=("arbitrary",),
            vmem_limit_bytes=int(min(max(4 * tile_bytes, 4 << 20), 16 << 20)),
        ),
        cost_estimate=pl.CostEstimate(
            flops=main,
            transcendentals=0,
            bytes_accessed=main * itemsize + _ACC_SUBLANES * _LANES * 4,
        ),
    )(y2d)

    # One cross-lane/sublane reduce + ragged tail + fused (-1/N) scale, all in f32.
    kernel_sum = jnp.sum(acc, dtype=jnp.float32)
    if main < total:
        kernel_sum = kernel_sum + jnp.sum(flat[main:], dtype=jnp.float32)
    return (kernel_sum * jnp.float32(-1.0 / total)).astype(out_dtype)


if __name__ == "__main__":
    key = jax.random.PRNGKey(0)
    k1, k2, k3, k4 = jax.random.split(key, 4)

    # 1) Multi-tile path: exercises init / accumulate across a 4-step grid.
    y1 = jax.random.normal(k1, (2, 4, 64, 64), dtype=jnp.float32)   # 32768 elems
    l1 = generator_loss(y1, block_rows=64)                          # grid = (4,)
    jax.block_until_ready(l1)
    r1 = jnp.mean(-y1)
    assert jnp.allclose(l1, r1, atol=1e-5, rtol=1e-5), (l1, r1)

    # 2) Ragged element count: exercises the aligned-prefix + jnp-tail path.
    y2 = jax.random.normal(k2, (3, 1, 37, 41), dtype=jnp.float32)   # 4551 elems
    l2 = generator_loss(y2)
    jax.block_until_ready(l2)
    r2 = jnp.mean(-y2)
    assert jnp.allclose(l2, r2, atol=1e-5, rtol=1e-5), (l2, r2)

    # 3) Tiny input: short-circuits to plain jnp (kernel launch would dominate).
    y3 = jax.random.normal(k3, (2, 1, 16, 16), dtype=jnp.float32)   # 512 elems
    l3 = generator_loss(y3)
    jax.block_until_ready(l3)
    r3 = jnp.mean(-y3)
    assert jnp.allclose(l3, r3, atol=1e-6, rtol=1e-6), (l3, r3)

    # 4) bf16 input: exercises dtype-aware sublane rounding + f32 accumulation.
    y4 = jax.random.normal(k4, (2, 4, 64, 64), dtype=jnp.bfloat16)  # 32768 elems
    l4 = generator_loss(y4)
    jax.block_until_ready(l4)
    r4 = jnp.mean(-y4.astype(jnp.float32))
    assert jnp.allclose(l4.astype(jnp.float32), r4, atol=1e-2, rtol=1e-2), (l4, r4)

    print("KERNEL_OK")
</pallas_src>

<mosaic_0001>
module attributes {stable_mosaic.version = 11 : i64} {
  func.func @_neg_mean_sum_kernel(%arg0: i32, %arg1: memref<64x128xf32, #tpu.memory_space<vmem>>, %arg2: memref<8x128xf32, #tpu.memory_space<vmem>>) attributes {dimension_semantics = [#tpu.dimension_semantics<arbitrary>], iteration_bounds = array<i64: 4>, scalar_prefetch = 0 : i64, scratch_operands = 0 : i64, tpu.core_type = #tpu.core_type<tc>, window_params = [{transform_indices = @transform_0, window_bounds = array<i64: 64, 128>}, {pipeline_mode = #tpu.pipeline_mode<synchronous>, transform_indices = @transform_1, window_bounds = array<i64: 8, 128>}]} {
    %c0_i32 = arith.constant 0 : i32
    %0 = arith.cmpi eq, %arg0, %c0_i32 : i32
    %1 = arith.extui %0 : i1 to i32
    %c0_i32_0 = arith.constant 0 : i32
    %2 = arith.cmpi ne, %1, %c0_i32_0 : i32
    scf.if %2 {
      %cst_6 = arith.constant 0.000000e+00 : f32
      %9 = vector.broadcast %cst_6 : f32 to vector<8x128xf32>
      %c0_7 = arith.constant 0 : index
      %c0_8 = arith.constant 0 : index
      %10 = vector.load %arg2[%c0_7, %c0_8] : memref<8x128xf32, #tpu.memory_space<vmem>>, vector<8x128xf32>
      tpu.vector_store %arg2[%c0_7, %c0_8], %9 {strides = array<i32>} : memref<8x128xf32, #tpu.memory_space<vmem>>, vector<8x128xf32>,
    } else {
    }
    %c0 = arith.constant 0 : index
    %c0_1 = arith.constant 0 : index
    %3 = vector.load %arg1[%c0, %c0_1] : memref<64x128xf32, #tpu.memory_space<vmem>>, vector<64x128xf32>
    %c0_2 = arith.constant 0 : index
    %c0_3 = arith.constant 0 : index
    %4 = vector.load %arg2[%c0_2, %c0_3] : memref<8x128xf32, #tpu.memory_space<vmem>>, vector<8x128xf32>
    %5 = vector.shape_cast %3 : vector<64x128xf32> to vector<8x8x128xf32>
    %cst = arith.constant dense<0.000000e+00> : vector<8x128xf32>
    %6 = vector.multi_reduction <add>, %5, %cst [0] : vector<8x8x128xf32> to vector<8x128xf32>
    %7 = arith.addf %4, %6 : vector<8x128xf32>
    %c0_4 = arith.constant 0 : index
    %c0_5 = arith.constant 0 : index
    %8 = vector.load %arg2[%c0_4, %c0_5] : memref<8x128xf32, #tpu.memory_space<vmem>>, vector<8x128xf32>
    tpu.vector_store %arg2[%c0_4, %c0_5], %7 {strides = array<i32>} : memref<8x128xf32, #tpu.memory_space<vmem>>, vector<8x128xf32>,
    return
  }
  func.func @transform_0(%arg0: i32) -> (i32, i32) {
    %c0_i32 = arith.constant 0 : i32
    %c0_i32_0 = arith.constant 0 : i32
    return %arg0, %c0_i32 : i32, i32
  }
  func.func @transform_1(%arg0: i32) -> (i32, i32) {
    %c0_i32 = arith.constant 0 : i32
    %c0_i32_0 = arith.constant 0 : i32
    %c0_i32_1 = arith.constant 0 : i32
    return %c0_i32, %c0_i32_0 : i32, i32
  }
}

</mosaic_0001>

<llo_original>
// kernel: tpu_custom_call.1
$region0: #{tpu_custom_call.1}
  #allocation0 [shape = 'u32[]', space=smem, size = 0x4, offset = 0x4, fixed_abs, tag = 'smem constant byte address 0x4 - core index']
  #allocation1 [shape = 'u32[144,128]{1,0:T(1,128)}', space=vmem, size = 0x12000, scoped, tag = 'internal scratch']
  %s0 = inlined_call_operand.hbm [shape: f32[256,128], index: 0, kind: input, shape index: {}]
  %s1 = inlined_call_operand.hbm [shape: f32[8,128], index: 1, kind: output, shape index: {}]
  %s2 = sld [smem:[#allocation0]]
  $region45: #{tpu_custom_call.1} parent=0
    _
  %s4 = ssub.s32 1, %s2
  %s5 = scalar_select 0, %s4, %s2
  $region1: #{tpu_custom_call.1} parent=0
    #allocation2 [shape = 'u8[65536]{0}', space=vmem, size = 0x10000, scoped, tag = 'input window, operand 0']
    #allocation3 [shape = 's32[2]{0}', space=sflag, size = 0x8, scoped, tag = 'scoped memory for tpu_custom_call.1']
    #allocation4 [shape = 's32[2]{0}', space=sflag, size = 0x8, scoped, tag = 'scoped memory for tpu_custom_call.1']
    #allocation5 [shape = 'u8[4096]{0}', space=vmem, size = 0x1000, scoped, tag = 'output window, operand 0, single buffered']
    %6 = vsyncpa [#allocation3], 0
    %s7 = scalar_lea.sflag [#allocation3], 1
    %8 = vsyncpa %s7, 0
    %9 = vsyncpa [#allocation4], 0
    loop: start=0, step=1, limit=6
    $region2: #{tpu_custom_call.1} parent=1 // loop_pre_header
      _
    $region3: #{tpu_custom_call.1} parent=1 // loop_header
      %s11 = sphi 0, %s15
      %p12 = scmp.ge.s32.totalorder %s11, 6
      %s21 = sphi 0, %s23
      %s24 = sphi 0, %s21
      %s25 = sphi 0, %s24
      %s41 = sphi 0, %s25
      %s45 = sphi 0, %s45
      %s47 = sphi 0, %s45
      %s48 = sphi 0, %s47
      %s62 = sphi 0, %s48
    $region4: #{tpu_custom_call.1} parent=1 // loop_header_branch
      %14 = sbr.rel (%p12) target = $region8
    $region5: #{tpu_custom_call.1} parent=1 // loop_body
      %s16 = ssub.s32 %s11, 1
      %s17 = ssub.s32 %s11, 2
      %s18 = sadd.s32 %s11, 1
      %s19 = ssub.s32 %s11, %s18
      %p20 = scmp.eq.s32.totalorder %s19, 0
      %s22 = sadd.s32 %s21, 1
      %s23 = scalar_select %p20, %s21, %s22
      %p26 = pneg %p20
      %p27 = scmp.eq.s32.totalorder %s11, 3
      %p28 = por %p26, %p27
      %p29 = scmp.ne.s32.totalorder %s21, %s24
      %p30 = scmp.eq.s32.totalorder %s11, 0
      %p31 = por %p29, %p30
      %p32 = scmp.ne.s32.totalorder %s21, %s24
      %p33 = scmp.eq.s32.totalorder %s16, 3
      %p34 = por %p32, %p33
      %p35 = scmp.ne.s32.totalorder %s24, %s25
      %p36 = scmp.eq.s32.totalorder %s16, 0
      %p37 = por %p35, %p36
      %p38 = scmp.ne.s32.totalorder %s24, %s25
      %p39 = scmp.eq.s32.totalorder %s17, 3
      %p40 = por %p38, %p39
      %p42 = scmp.ne.s32.totalorder %s25, %s41
      %p43 = scmp.eq.s32.totalorder %s17, 0
      %p44 = por %p42, %p43
      %s46 = sadd.s32 %s45, 1
      %p49 = scmp.eq.s32.totalorder %s11, 3
      %p50 = scmp.ne.s32.totalorder %s45, %s47
      %p51 = scmp.eq.s32.totalorder %s11, 0
      %p52 = por %p50, %p51
      %p53 = scmp.ne.s32.totalorder %s45, %s47
      %p54 = scmp.eq.s32.totalorder %s16, 3
      %p55 = por %p53, %p54
      %p56 = scmp.ne.s32.totalorder %s47, %s48
      %p57 = scmp.eq.s32.totalorder %s16, 0
      %p58 = por %p56, %p57
      %p59 = scmp.ne.s32.totalorder %s47, %s48
      %p60 = scmp.eq.s32.totalorder %s17, 3
      %p61 = por %p59, %p60
      %p63 = scmp.ne.s32.totalorder %s48, %s62
      %p64 = scmp.eq.s32.totalorder %s17, 0
      %p65 = por %p63, %p64
      %p66 = scmp.le.s32.totalorder 1, %s11
      %p67 = scmp.lt.s32.totalorder %s11, 5
      %p68 = pnand %p66, %p67
      %p69 = pneg %p68
      // Predicated region
      $region9: #{tpu_custom_call.1} parent=5 // pred_check
        _
      $region10: #{tpu_custom_call.1} parent=5 // pred_check_branch
        %71 = sbr.rel (%p68) target = $region12
      $region11: #{tpu_custom_call.1} parent=5 // pred_region
        %s72 = ssub.s32 %s11, 1
      $region12: #{tpu_custom_call.1} parent=5 // pred_fallthru
        _
      %p73 = scmp.lt.s32.totalorder %s11, 4
      // Predicated region
      $region13: #{tpu_custom_call.1} parent=5 // pred_check
        %p74 = pneg %p73
      $region14: #{tpu_custom_call.1} parent=5 // pred_check_branch
        %76 = sbr.rel (%p74) target = $region16
      $region15: #{tpu_custom_call.1} parent=5 // pred_region
        // Predicated region
        $region17: #{tpu_custom_call.1} parent=15 // pred_check
          %p77 = pneg %p31
        $region18: #{tpu_custom_call.1} parent=15 // pred_check_branch
          %79 = sbr.rel (%p77) target = $region20
        $region19: #{tpu_custom_call.1} parent=15 // pred_region
          %s80 = sand.u32 %s21, 1
          %s81 = scalar_lea.sflag [#allocation3], %s80
          %s82 = sand.u32 %s21, 1
          %s83 = smul.addr %s82, 64
          %s84 = scalar_lea.vmem [#allocation2], %s83
          %s85 = smul.u32 8, %s11
          %s87 = ssub.s32 1024, 1024
          %88 = vsyncadd %s81, %s87
          %s89 = smul.addr %s85, 128
          %s90 = scalar_lea.hbm %s0, %s89
          %s91 = sshll.u32 %s84, 4
          %s92 = int_to_ptr.vmem [resolvable:$true] %s91
          %97 = dma.hbm_to_vmem [thread:$0]  %s90, 1024, %s92, %s81, 128, 128, 8
        $region20: #{tpu_custom_call.1} parent=15 // pred_fallthru
          _
      $region16: #{tpu_custom_call.1} parent=5 // pred_fallthru
        _
      %p98 = scmp.le.s32.totalorder 1, %s11
      %p99 = scmp.lt.s32.totalorder %s11, 5
      %p100 = pnand %p98, %p99
      %p101 = pneg %p100
      // Predicated region
      $region21: #{tpu_custom_call.1} parent=5 // pred_check
        _
      $region22: #{tpu_custom_call.1} parent=5 // pred_check_branch
        %103 = sbr.rel (%p100) target = $region24
      $region23: #{tpu_custom_call.1} parent=5 // pred_region
        %s104 = ssub.s32 %s11, 1
        %s105 = sand.u32 %s24, 1
        %s106 = scalar_lea.sflag [#allocation3], %s105
        %s107 = sand.u32 %s24, 1
        %s108 = smul.addr %s107, 64
        %s109 = scalar_lea.vmem [#allocation2], %s108
        // Predicated region
        $region25: #{tpu_custom_call.1} parent=23 // pred_check
          %p110 = pneg %p37
        $region26: #{tpu_custom_call.1} parent=23 // pred_check_branch
          %112 = sbr.rel (%p110) target = $region28
        $region27: #{tpu_custom_call.1} parent=23 // pred_region
          %113 = dma.done %s106, 1024
        $region28: #{tpu_custom_call.1} parent=23 // pred_fallthru
          _
        %s114 = sand.u32 %s24, 1
        %s115 = scalar_lea.sflag [#allocation3], %s114
        %s116 = sand.u32 %s24, 1
        %s117 = smul.addr %s116, 64
        %s118 = scalar_lea.vmem [#allocation2], %s117
        %p119 = pneg %p37
        %p120 = pneg %p34
        %p121 = pneg %p58
        %p122 = pneg %p55
        %s123 = smul.u32 8, %s16
        %p124 = scmp.eq.s32.totalorder %s16, 0
        // Predicated region
        $region29: #{tpu_custom_call.1} parent=23 // pred_check
          %p125 = pneg %p124
        $region30: #{tpu_custom_call.1} parent=23 // pred_check_branch
          %127 = sbr.rel (%p125) target = $region32
        $region31: #{tpu_custom_call.1} parent=23 // pred_region
          %128 = vst [vmem:[#allocation5] sm:$0xff] 0.0
        $region32: #{tpu_custom_call.1} parent=23 // pred_fallthru
          _
        %v129 = vld [vmem:[%s109] sm:$0xff]
        %v130 = vld [vmem:[%s109 + $0x8] sm:$0xff]
        %v131 = vld [vmem:[%s109 + $0x10] sm:$0xff]
        %v132 = vld [vmem:[%s109 + $0x18] sm:$0xff]
        %v133 = vld [vmem:[%s109 + $0x20] sm:$0xff]
        %v134 = vld [vmem:[%s109 + $0x28] sm:$0xff]
        %v135 = vld [vmem:[%s109 + $0x30] sm:$0xff]
        %v136 = vld [vmem:[%s109 + $0x38] sm:$0xff]
        %v137 = vld [vmem:[#allocation5] sm:$0xff]
        %v138 = vadd.f32 %v129, %v130
        %v139 = vadd.f32 %v138, %v131
        %v140 = vadd.f32 %v139, %v132
        %v141 = vadd.f32 %v140, %v133
        %v142 = vadd.f32 %v141, %v134
        %v143 = vadd.f32 %v142, %v135
        %v144 = vadd.f32 %v143, %v136
        %v145 = vadd.f32 %v137, %v144
        %146 = vst [vmem:[#allocation5] sm:$0xff] %v145
        // Predicated region
        $region33: #{tpu_custom_call.1} parent=23 // pred_check
          %p147 = pneg %p55
        $region34: #{tpu_custom_call.1} parent=23 // pred_check_branch
          %149 = sbr.rel (%p147) target = $region36
        $region35: #{tpu_custom_call.1} parent=23 // pred_region
          %s151 = ssub.s32 128, 128
          %152 = vsyncadd [#allocation4], %s151
          %s154 = sshll.u32 [#allocation5], 4
          %s155 = int_to_ptr.vmem [resolvable:$true] %s154
          %157 = dma.vmem_to_hbm [thread:$0]  %s155, 128, %s1, [#allocation4]
        $region36: #{tpu_custom_call.1} parent=23 // pred_fallthru
          _
        // Predicated region
        $region37: #{tpu_custom_call.1} parent=23 // pred_check
          %p158 = pneg %p55
        $region38: #{tpu_custom_call.1} parent=23 // pred_check_branch
          %160 = sbr.rel (%p158) target = $region40
        $region39: #{tpu_custom_call.1} parent=23 // pred_region
          %161 = dma.done [#allocation4], 128
        $region40: #{tpu_custom_call.1} parent=23 // pred_fallthru
          _
      $region24: #{tpu_custom_call.1} parent=5 // pred_fallthru
        _
      %p162 = scmp.le.s32.totalorder 2, %s11
      // Predicated region
      $region41: #{tpu_custom_call.1} parent=5 // pred_check
        %p163 = pneg %p162
      $region42: #{tpu_custom_call.1} parent=5 // pred_check_branch
        %165 = sbr.rel (%p163) target = $region44
      $region43: #{tpu_custom_call.1} parent=5 // pred_region
        %s166 = ssub.s32 %s11, 2
      $region44: #{tpu_custom_call.1} parent=5 // pred_fallthru
        _
    $region6: #{tpu_custom_call.1} parent=1 // loop_footer
      %s15 = sadd.s32 1, %s11
    $region7: #{tpu_custom_call.1} parent=1 // loop_footer_branch
      %10 = sbr.rel target = $region3
    $region8: #{tpu_custom_call.1} parent=1 // loop_exit
      _
    %167 = vsyncpa [#allocation3], 1
    %s168 = scalar_lea.sflag [#allocation3], 1
    %169 = vsyncpa %s168, 1
    %170 = vsyncpa [#allocation4], 1
    %s171 = scalar_lea.sflag [#allocation4], 1
    %172 = vsyncpa %s171, 1

</llo_original>
